<compile_context>
chip_gen: v6e
topology: v6e:2x2x1
jax: 0.10.0
libtpu: 0.0.40
codegen_flags: <defaults>
</compile_context>

<pallas_src>
import functools

import jax
import jax.numpy as jnp
from jax import lax
from jax.experimental import pallas as pl
from jax.experimental.pallas import tpu as pltpu

H1 = 256
H2 = 128
LEAKY_SLOPE = 0.01       # nn.LeakyReLU default
BN_EPS = 1e-5            # nn.BatchNorm1d default
COS_EPS = 1e-8           # nn.CosineSimilarity eps


def _leaky_relu(x):
    return jnp.where(x > 0, x, LEAKY_SLOPE * x)


def _cosine_p(h1, h2):
    """p = 0.5 * (cos(h1, h2) + 1), PyTorch eps semantics (per row)."""
    dot = jnp.sum(h1 * h2, axis=1)
    n1sq = jnp.sum(h1 * h1, axis=1)
    n2sq = jnp.sum(h2 * h2, axis=1)
    # max(||h1||*||h2||, eps) == sqrt(max((||h1||*||h2||)^2, eps^2)); rsqrt -> EUP.
    inv = lax.rsqrt(jnp.maximum(n1sq * n2sq, COS_EPS * COS_EPS))
    return (dot * inv + 1.0) * 0.5


# ----------------------------------------------------------------------------
# Kernels
# ----------------------------------------------------------------------------
def wl_kernel_blockdiag(x_ref, w1_ref, b1_ref, w2_ref, b2_ref, w3_ref, b3_ref,
                        o_ref):
    """Lane-stacked Siamese pass (v6e/v7x, 2x256^2 MXU).

    Weights are block-diagonal duplicates built in the wrapper, so both halves
    of x run through a single matmul per layer; BN is pre-folded into the
    layer-2/3 weights. Activations stay bf16 between layers (f32 accumulation).
    """
    bf = jnp.bfloat16
    x = x_ref[...]                                            # (bm, 2d) f32
    h = jnp.dot(x.astype(bf), w1_ref[...],
                preferred_element_type=jnp.float32) + b1_ref[...]
    h = _leaky_relu(h.astype(bf))                             # (bm, 2*H1) bf16
    h = jnp.dot(h, w2_ref[...],
                preferred_element_type=jnp.float32) + b2_ref[...]
    h = _leaky_relu(h.astype(bf))                             # (bm, 2*H2) bf16
    h = jnp.dot(h, w3_ref[...],
                preferred_element_type=jnp.float32) + b3_ref[...]   # f32
    # Two halves are vreg-aligned lane blocks [0:128) and [128:256).
    h1 = h[:, :H2]
    h2 = h[:, H2:]
    p = _cosine_p(h1, h2)
    o_ref[...] = p[None, :]                                   # lane-dense store


def wl_kernel_rowstack(x_ref, w1_ref, b1_ref, w2_ref, b2_ref, w3_ref, b3_ref,
                       o_ref, h_scr, *, input_dim):
    """Row-stacked Siamese pass (v5e, 4x128^2 MXU).

    Layer 1 is issued as two dots written into the top/bottom row halves of a
    VMEM scratch (no lane-64 concat of the x tile). Elementwise stays f32
    (v5e has no bf16 VPU); matmul operands are bf16 with f32 accumulation.
    """
    bf = jnp.bfloat16
    block_m = x_ref.shape[0]
    x = x_ref[...]                                            # (bm, 2d) f32
    h_scr[:block_m, :] = _leaky_relu(
        jnp.dot(x[:, :input_dim].astype(bf), w1_ref[...],
                preferred_element_type=jnp.float32) + b1_ref[...])
    h_scr[block_m:, :] = _leaky_relu(
        jnp.dot(x[:, input_dim:].astype(bf), w1_ref[...],
                preferred_element_type=jnp.float32) + b1_ref[...])
    h = jnp.dot(h_scr[...].astype(bf), w2_ref[...],
                preferred_element_type=jnp.float32) + b2_ref[...]
    h = _leaky_relu(h)
    h = jnp.dot(h.astype(bf), w3_ref[...],
                preferred_element_type=jnp.float32) + b3_ref[...]   # (2bm, H2)
    h1 = h[:block_m, :]
    h2 = h[block_m:, :]
    p = _cosine_p(h1, h2)
    o_ref[...] = p[None, :]


# ----------------------------------------------------------------------------
# Parameter preparation (trace-time folds)
# ----------------------------------------------------------------------------
def prepare_params(params, *, mode):
    """Fold eval-mode BN into the next Linear; cast weights to bf16.

    mode == "blockdiag": additionally build block-diagonal duplicates
    W' = blkdiag(w, w) and tiled biases so both Siamese halves run as lane
    blocks through a single matmul per layer.
    """
    (w1, b1, w2, b2, w3, b3, s1, t1, s2, t2) = params
    # L2(BN1(h)) = (h*s1 + t1) @ w2 + b2 = h @ (s1[:,None]*w2) + (t1 @ w2 + b2)
    w2f = s1.reshape(-1, 1) * w2
    b2f = t1 @ w2 + b2
    w3f = s2.reshape(-1, 1) * w3
    b3f = t2 @ w3 + b3
    bf = jnp.bfloat16

    if mode == "rowstack":
        return (w1.astype(bf), b1, w2f.astype(bf), b2f, w3f.astype(bf), b3f)

    def blkdiag(w):
        z = jnp.zeros_like(w)
        return jnp.concatenate(
            [jnp.concatenate([w, z], axis=1),
             jnp.concatenate([z, w], axis=1)], axis=0)

    def dup(b):
        return jnp.concatenate([b, b], axis=1)

    return (blkdiag(w1).astype(bf), dup(b1),
            blkdiag(w2f).astype(bf), dup(b2f),
            blkdiag(w3f).astype(bf), dup(b3f))


def _default_mode():
    """Pick the Siamese-fusion layout from the MXU width of the local chip."""
    try:
        kind = jax.devices()[0].device_kind.lower()
    except Exception:  # pragma: no cover - detection failure -> sane default
        kind = ""
    # 128-wide-MXU chips: keep row stacking. 256-wide (v6e/v7x): block-diag.
    if any(tag in kind for tag in ("v2", "v3", "v4", "v5 lite", "v5e", "v5lite")):
        return "rowstack"
    return "blockdiag"


# ----------------------------------------------------------------------------
# Wrapper
# ----------------------------------------------------------------------------
def wl_forward(x, params, *, input_dim, block_m=None, mode=None):
    B = x.shape[0]
    assert x.shape[1] == 2 * input_dim

    if mode is None:
        mode = _default_mode()

    if block_m is None:
        if B <= 1024:
            # Single tile covering the whole (sublane-rounded) batch.
            block_m = max(8, ((B + 7) // 8) * 8)
        else:
            # Big lane-dense tiles (per-step overhead ~0.35us amortized), but
            # keep >= ~4 tiles so both v7x TensorCores stay loaded.
            tgt = pl.cdiv(B, 4)
            block_m = int(min(2048, max(512, ((tgt + 127) // 128) * 128)))

    padded_B = pl.cdiv(B, block_m) * block_m
    num_blocks = padded_B // block_m
    # Tiling constraints: sublane-aligned rows; lane-dense output blocks.
    assert block_m % 8 == 0
    assert block_m % 128 == 0 or padded_B == block_m

    if padded_B != B:
        x = jnp.pad(x, ((0, padded_B - B), (0, 0)))

    w1, b1, w2, b2, w3, b3 = prepare_params(params, mode=mode)

    x_spec = pl.BlockSpec((block_m, 2 * input_dim), lambda i: (i, 0))
    full = lambda a: pl.BlockSpec(a.shape, lambda i: (0, 0))   # grid-invariant

    # Advisory cost estimate (two parser passes per row; rsqrt per row).
    flops = 2 * B * 2 * (input_dim * H1 + H1 * H2 + H2 * H2)
    bytes_accessed = (int(x.size) * 4 + padded_B * 4
                      + sum(int(a.size) * a.dtype.itemsize
                            for a in (w1, b1, w2, b2, w3, b3)))
    cost = pl.CostEstimate(flops=int(flops), transcendentals=int(B),
                           bytes_accessed=int(bytes_accessed))

    if mode == "blockdiag":
        kernel = wl_kernel_blockdiag
        scratch_shapes = ()
    else:
        kernel = functools.partial(wl_kernel_rowstack, input_dim=input_dim)
        scratch_shapes = [pltpu.VMEM((2 * block_m, H1), jnp.float32)]

    out = pl.pallas_call(
        kernel,
        out_shape=jax.ShapeDtypeStruct((1, padded_B), jnp.float32),
        grid=(num_blocks,),
        in_specs=[x_spec,
                  full(w1), full(b1), full(w2), full(b2), full(w3), full(b3)],
        out_specs=pl.BlockSpec((1, block_m), lambda i: (0, i)),
        scratch_shapes=scratch_shapes,
        compiler_params=pltpu.CompilerParams(
            dimension_semantics=("parallel",)),   # 2-TC split on v7x
        # TODO(synk): if an xprof profile on v7x shows only one TensorCore
        # active, switch to pltpu.CORE_PARALLEL / pl.core_map per-core split.
        cost_estimate=cost,
    )(x, w1, b1, w2, b2, w3, b3)

    return out.reshape(padded_B)[:B]


# ----------------------------------------------------------------------------
# Init + references
# ----------------------------------------------------------------------------
def init_params(key, input_dim):
    """Matches model_init(): kaiming_normal_ Linear weights (fan_in, gain
    sqrt(2)), zero biases; fresh BatchNorm (gamma=1, beta=0, mean=0, var=1)
    expressed as eval-mode scale + shift. Weights stored [in, out]."""
    k1, k2, k3 = jax.random.split(key, 3)

    def kaiming(k, fan_in, fan_out):
        std = (2.0 / fan_in) ** 0.5
        return jax.random.normal(k, (fan_in, fan_out), jnp.float32) * std

    w1 = kaiming(k1, input_dim, H1); b1 = jnp.zeros((1, H1), jnp.float32)
    w2 = kaiming(k2, H1, H2);        b2 = jnp.zeros((1, H2), jnp.float32)
    w3 = kaiming(k3, H2, H2);        b3 = jnp.zeros((1, H2), jnp.float32)

    def bn_scale_shift(h):
        gamma = jnp.ones((1, h), jnp.float32); beta = jnp.zeros((1, h), jnp.float32)
        mean = jnp.zeros((1, h), jnp.float32); var = jnp.ones((1, h), jnp.float32)
        scale = gamma / jnp.sqrt(var + BN_EPS)
        shift = beta - mean * scale
        return scale, shift

    s1, t1 = bn_scale_shift(H1)
    s2, t2 = bn_scale_shift(H2)
    return (w1, b1, w2, b2, w3, b3, s1, t1, s2, t2)


def wl_reference_mirror(x, params, *, input_dim, bf16_activations):
    """Pure-JAX reference mirroring the kernel numerics exactly
    (BN folded into the next Linear, bf16 weights, f32 accumulation)."""
    (w1, b1, w2, b2, w3, b3, s1, t1, s2, t2) = params
    w2f = s1.reshape(-1, 1) * w2; b2f = t1 @ w2 + b2
    w3f = s2.reshape(-1, 1) * w3; b3f = t2 @ w3 + b3
    bf = jnp.bfloat16
    w1b, w2b, w3b = w1.astype(bf), w2f.astype(bf), w3f.astype(bf)

    def act(h):
        return _leaky_relu(h.astype(bf)) if bf16_activations else _leaky_relu(h)

    def parser(z):
        h = jnp.dot(z.astype(bf), w1b, preferred_element_type=jnp.float32) + b1
        h = act(h)
        h = jnp.dot(h.astype(bf), w2b, preferred_element_type=jnp.float32) + b2f
        h = act(h)
        h = jnp.dot(h.astype(bf), w3b, preferred_element_type=jnp.float32) + b3f
        return h.astype(jnp.float32)

    h1 = parser(x[:, :input_dim])
    h2 = parser(x[:, input_dim:])
    return _cosine_p(h1, h2)


def wl_reference_f32(x, params, *, input_dim):
    """Full-precision PyTorch-semantics reference (BN applied explicitly)."""
    (w1, b1, w2, b2, w3, b3, s1, t1, s2, t2) = params
    hi = lax.Precision.HIGHEST

    def parser(z):
        h = jnp.dot(z, w1, precision=hi) + b1
        h = jnp.where(h > 0, h, LEAKY_SLOPE * h)
        h = h * s1 + t1                     # BatchNorm1d (eval)  [Dropout = id]
        h = jnp.dot(h, w2, precision=hi) + b2
        h = jnp.where(h > 0, h, LEAKY_SLOPE * h)
        h = h * s2 + t2
        h = jnp.dot(h, w3, precision=hi) + b3
        return h

    h1 = parser(x[:, :input_dim])
    h2 = parser(x[:, input_dim:])
    dot = jnp.sum(h1 * h2, axis=1)
    n1 = jnp.sqrt(jnp.sum(h1 * h1, axis=1))
    n2 = jnp.sqrt(jnp.sum(h2 * h2, axis=1))
    return (dot / jnp.maximum(n1 * n2, COS_EPS) + 1.0) * 0.5


if __name__ == "__main__":
    input_dim = 64
    key = jax.random.PRNGKey(0)
    kx, kx2, kp = jax.random.split(key, 3)
    params = init_params(kp, input_dim)

    # Small ragged batch (pads to the sublane tile; single grid step) and a
    # larger batch (multi-tile / megacore-parallel path).
    x_small = jax.random.normal(kx, (6, 2 * input_dim), jnp.float32)
    x_big = jax.random.normal(kx2, (1536, 2 * input_dim), jnp.float32)

    # Exercise BOTH fusion layouts explicitly so each compiles and is checked
    # regardless of the local chip generation.
    for mode, bf16_act in (("blockdiag", True), ("rowstack", False)):
        for x in (x_small, x_big):
            p = jax.block_until_ready(
                wl_forward(x, params, input_dim=input_dim, mode=mode))
            assert p.shape == (x.shape[0],)
            assert bool(jnp.all(jnp.isfinite(p)))
            p_mirror = wl_reference_mirror(x, params, input_dim=input_dim,
                                           bf16_activations=bf16_act)
            assert jnp.allclose(p, p_mirror, atol=5e-4, rtol=5e-4), (
                mode, x.shape, p, p_mirror)
            p_f32 = wl_reference_f32(x, params, input_dim=input_dim)
            assert jnp.allclose(p, p_f32, atol=2e-2, rtol=2e-2), (
                mode, x.shape, p, p_f32)

    # Auto mode (device-kind heuristic) — the path a deployment would take.
    p_auto = jax.block_until_ready(
        wl_forward(x_small, params, input_dim=input_dim))
    assert jnp.allclose(
        p_auto, wl_reference_f32(x_small, params, input_dim=input_dim),
        atol=2e-2, rtol=2e-2)

    print("KERNEL_OK")
</pallas_src>

<mosaic_0001>
module attributes {stable_mosaic.version = 11 : i64} {
  func.func @wl_kernel_blockdiag(%arg0: i32, %arg1: memref<8x128xf32, #tpu.memory_space<vmem>>, %arg2: memref<128x512xbf16, #tpu.memory_space<vmem>>, %arg3: memref<1x512xf32, #tpu.memory_space<vmem>>, %arg4: memref<512x256xbf16, #tpu.memory_space<vmem>>, %arg5: memref<1x256xf32, #tpu.memory_space<vmem>>, %arg6: memref<256x256xbf16, #tpu.memory_space<vmem>>, %arg7: memref<1x256xf32, #tpu.memory_space<vmem>>, %arg8: memref<1x8xf32, #tpu.memory_space<vmem>>) attributes {dimension_semantics = [#tpu.dimension_semantics<parallel>], iteration_bounds = array<i64: 1>, scalar_prefetch = 0 : i64, scratch_operands = 0 : i64, tpu.core_type = #tpu.core_type<tc>, window_params = [{transform_indices = @transform_0, window_bounds = array<i64: 8, 128>}, {pipeline_mode = #tpu.pipeline_mode<synchronous>, transform_indices = @transform_1, window_bounds = array<i64: 128, 512>}, {pipeline_mode = #tpu.pipeline_mode<synchronous>, transform_indices = @transform_2, window_bounds = array<i64: 1, 512>}, {pipeline_mode = #tpu.pipeline_mode<synchronous>, transform_indices = @transform_3, window_bounds = array<i64: 512, 256>}, {pipeline_mode = #tpu.pipeline_mode<synchronous>, transform_indices = @transform_4, window_bounds = array<i64: 1, 256>}, {pipeline_mode = #tpu.pipeline_mode<synchronous>, transform_indices = @transform_5, window_bounds = array<i64: 256, 256>}, {pipeline_mode = #tpu.pipeline_mode<synchronous>, transform_indices = @transform_6, window_bounds = array<i64: 1, 256>}, {transform_indices = @transform_7, window_bounds = array<i64: 1, 8>}]} {
    %c0 = arith.constant 0 : index
    %c0_0 = arith.constant 0 : index
    %0 = vector.load %arg1[%c0, %c0_0] : memref<8x128xf32, #tpu.memory_space<vmem>>, vector<8x128xf32>
    %1 = arith.truncf %0 : vector<8x128xf32> to vector<8x128xbf16>
    %c0_1 = arith.constant 0 : index
    %c0_2 = arith.constant 0 : index
    %2 = vector.load %arg2[%c0_1, %c0_2] : memref<128x512xbf16, #tpu.memory_space<vmem>>, vector<128x512xbf16>
    %cst = arith.constant dense<0.000000e+00> : vector<8x512xf32>
    %3 = tpu.matmul %1, %2, %cst {dimension_numbers = #tpu.dot_dimension_numbers<[1], [0], [0], [1], [0, 0, 1, 1], [], []>} : vector<8x128xbf16>, vector<128x512xbf16>, vector<8x512xf32> -> vector<8x512xf32>
    %c0_3 = arith.constant 0 : index
    %c0_4 = arith.constant 0 : index
    %4 = vector.load %arg3[%c0_3, %c0_4] : memref<1x512xf32, #tpu.memory_space<vmem>>, vector<1x512xf32>
    %5 = vector.broadcast %4 : vector<1x512xf32> to vector<8x512xf32>
    %6 = arith.addf %3, %5 : vector<8x512xf32>
    %7 = arith.truncf %6 : vector<8x512xf32> to vector<8x512xbf16>
    %cst_5 = arith.constant 0.000000e+00 : bf16
    %8 = vector.broadcast %cst_5 : bf16 to vector<8x512xbf16>
    %9 = arith.cmpf ogt, %7, %8 : vector<8x512xbf16>
    %cst_6 = arith.constant 1.000980e-02 : bf16
    %10 = vector.broadcast %cst_6 : bf16 to vector<8x512xbf16>
    %11 = arith.mulf %10, %7 : vector<8x512xbf16>
    %12 = arith.select %9, %7, %11 : vector<8x512xi1>, vector<8x512xbf16>
    %c0_7 = arith.constant 0 : index
    %c0_8 = arith.constant 0 : index
    %13 = vector.load %arg4[%c0_7, %c0_8] : memref<512x256xbf16, #tpu.memory_space<vmem>>, vector<512x256xbf16>
    %cst_9 = arith.constant dense<0.000000e+00> : vector<8x256xf32>
    %14 = tpu.matmul %12, %13, %cst_9 {dimension_numbers = #tpu.dot_dimension_numbers<[1], [0], [0], [1], [0, 0, 1, 1], [], []>} : vector<8x512xbf16>, vector<512x256xbf16>, vector<8x256xf32> -> vector<8x256xf32>
    %c0_10 = arith.constant 0 : index
    %c0_11 = arith.constant 0 : index
    %15 = vector.load %arg5[%c0_10, %c0_11] : memref<1x256xf32, #tpu.memory_space<vmem>>, vector<1x256xf32>
    %16 = vector.broadcast %15 : vector<1x256xf32> to vector<8x256xf32>
    %17 = arith.addf %14, %16 : vector<8x256xf32>
    %18 = arith.truncf %17 : vector<8x256xf32> to vector<8x256xbf16>
    %cst_12 = arith.constant 0.000000e+00 : bf16
    %19 = vector.broadcast %cst_12 : bf16 to vector<8x256xbf16>
    %20 = arith.cmpf ogt, %18, %19 : vector<8x256xbf16>
    %cst_13 = arith.constant 1.000980e-02 : bf16
    %21 = vector.broadcast %cst_13 : bf16 to vector<8x256xbf16>
    %22 = arith.mulf %21, %18 : vector<8x256xbf16>
    %23 = arith.select %20, %18, %22 : vector<8x256xi1>, vector<8x256xbf16>
    %c0_14 = arith.constant 0 : index
    %c0_15 = arith.constant 0 : index
    %24 = vector.load %arg6[%c0_14, %c0_15] : memref<256x256xbf16, #tpu.memory_space<vmem>>, vector<256x256xbf16>
    %cst_16 = arith.constant dense<0.000000e+00> : vector<8x256xf32>
    %25 = tpu.matmul %23, %24, %cst_16 {dimension_numbers = #tpu.dot_dimension_numbers<[1], [0], [0], [1], [0, 0, 1, 1], [], []>} : vector<8x256xbf16>, vector<256x256xbf16>, vector<8x256xf32> -> vector<8x256xf32>
    %c0_17 = arith.constant 0 : index
    %c0_18 = arith.constant 0 : index
    %26 = vector.load %arg7[%c0_17, %c0_18] : memref<1x256xf32, #tpu.memory_space<vmem>>, vector<1x256xf32>
    %27 = vector.broadcast %26 : vector<1x256xf32> to vector<8x256xf32>
    %28 = arith.addf %25, %27 : vector<8x256xf32>
    %29 = vector.extract_strided_slice %28 {offsets = [0, 0], sizes = [8, 128], strides = [1, 1]} : vector<8x256xf32> to vector<8x128xf32>
    %30 = vector.extract_strided_slice %28 {offsets = [0, 128], sizes = [8, 128], strides = [1, 1]} : vector<8x256xf32> to vector<8x128xf32>
    %31 = arith.mulf %29, %30 : vector<8x128xf32>
    %cst_19 = arith.constant dense<0.000000e+00> : vector<8xf32>
    %32 = vector.multi_reduction <add>, %31, %cst_19 [1] : vector<8x128xf32> to vector<8xf32>
    %33 = arith.mulf %29, %29 : vector<8x128xf32>
    %cst_20 = arith.constant dense<0.000000e+00> : vector<8xf32>
    %34 = vector.multi_reduction <add>, %33, %cst_20 [1] : vector<8x128xf32> to vector<8xf32>
    %35 = arith.mulf %30, %30 : vector<8x128xf32>
    %cst_21 = arith.constant dense<0.000000e+00> : vector<8xf32>
    %36 = vector.multi_reduction <add>, %35, %cst_21 [1] : vector<8x128xf32> to vector<8xf32>
    %37 = arith.mulf %34, %36 : vector<8xf32>
    %cst_22 = arith.constant 1.000000e-16 : f32
    %38 = vector.broadcast %cst_22 : f32 to vector<8xf32>
    %39 = arith.maximumf %37, %38 : vector<8xf32>
    %40 = math.rsqrt %39 : vector<8xf32>
    %41 = arith.mulf %32, %40 : vector<8xf32>
    %cst_23 = arith.constant 1.000000e+00 : f32
    %42 = vector.broadcast %cst_23 : f32 to vector<8xf32>
    %43 = arith.addf %41, %42 : vector<8xf32>
    %cst_24 = arith.constant 5.000000e-01 : f32
    %44 = vector.broadcast %cst_24 : f32 to vector<8xf32>
    %45 = arith.mulf %43, %44 : vector<8xf32>
    %46 = vector.shape_cast %45 : vector<8xf32> to vector<1x8xf32>
    %c0_25 = arith.constant 0 : index
    %c0_26 = arith.constant 0 : index
    %47 = vector.load %arg8[%c0_25, %c0_26] : memref<1x8xf32, #tpu.memory_space<vmem>>, vector<1x8xf32>
    tpu.vector_store %arg8[%c0_25, %c0_26], %46 {strides = array<i32>} : memref<1x8xf32, #tpu.memory_space<vmem>>, vector<1x8xf32>,
    return
  }
  func.func @transform_0(%arg0: i32) -> (i32, i32) {
    %c0_i32 = arith.constant 0 : i32
    %c0_i32_0 = arith.constant 0 : i32
    return %arg0, %c0_i32 : i32, i32
  }
  func.func @transform_1(%arg0: i32) -> (i32, i32) {
    %c0_i32 = arith.constant 0 : i32
    %c0_i32_0 = arith.constant 0 : i32
    %c0_i32_1 = arith.constant 0 : i32
    return %c0_i32, %c0_i32_0 : i32, i32
  }
  func.func @transform_2(%arg0: i32) -> (i32, i32) {
    %c0_i32 = arith.constant 0 : i32
    %c0_i32_0 = arith.constant 0 : i32
    %c0_i32_1 = arith.constant 0 : i32
    return %c0_i32, %c0_i32_0 : i32, i32
  }
  func.func @transform_3(%arg0: i32) -> (i32, i32) {
    %c0_i32 = arith.constant 0 : i32
    %c0_i32_0 = arith.constant 0 : i32
    %c0_i32_1 = arith.constant 0 : i32
    return %c0_i32, %c0_i32_0 : i32, i32
  }
  func.func @transform_4(%arg0: i32) -> (i32, i32) {
    %c0_i32 = arith.constant 0 : i32
    %c0_i32_0 = arith.constant 0 : i32
    %c0_i32_1 = arith.constant 0 : i32
    return %c0_i32, %c0_i32_0 : i32, i32
  }
  func.func @transform_5(%arg0: i32) -> (i32, i32) {
    %c0_i32 = arith.constant 0 : i32
    %c0_i32_0 = arith.constant 0 : i32
    %c0_i32_1 = arith.constant 0 : i32
    return %c0_i32, %c0_i32_0 : i32, i32
  }
  func.func @transform_6(%arg0: i32) -> (i32, i32) {
    %c0_i32 = arith.constant 0 : i32
    %c0_i32_0 = arith.constant 0 : i32
    %c0_i32_1 = arith.constant 0 : i32
    return %c0_i32, %c0_i32_0 : i32, i32
  }
  func.func @transform_7(%arg0: i32) -> (i32, i32) {
    %c0_i32 = arith.constant 0 : i32
    %c0_i32_0 = arith.constant 0 : i32
    return %c0_i32, %arg0 : i32, i32
  }
}

</mosaic_0001>

<llo_original>
// kernel: tpu_custom_call.1
$region0: #{tpu_custom_call.1}
  #allocation0 [shape = 'u32[]', space=smem, size = 0x4, offset = 0x4, fixed_abs, tag = 'smem constant byte address 0x4 - core index']
  #allocation1 [shape = 'u32[144,128]{1,0:T(1,128)}', space=vmem, size = 0x12000, scoped, tag = 'internal scratch']
  %s0 = inlined_call_operand.hbm [shape: f32[8,128], index: 0, kind: input, shape index: {}]
  %s1 = inlined_call_operand.hbm [shape: bf16[128,512], index: 1, kind: input, shape index: {}]
  %s2 = inlined_call_operand.hbm [shape: f32[1,512], index: 2, kind: input, shape index: {}]
  %s3 = inlined_call_operand.hbm [shape: bf16[512,256], index: 3, kind: input, shape index: {}]
  %s4 = inlined_call_operand.vmem [shape: f32[1,256], index: 4, kind: input, shape index: {}]
  %s5 = inlined_call_operand.hbm [shape: bf16[256,256], index: 5, kind: input, shape index: {}]
  %s6 = inlined_call_operand.vmem [shape: f32[1,256], index: 6, kind: input, shape index: {}]
  %s7 = inlined_call_operand.hbm [shape: f32[1,8], index: 7, kind: output, shape index: {}]
  %s8 = sld [smem:[#allocation0]]
  $region58: #{tpu_custom_call.1} parent=0
    _
  %s10 = ssub.s32 1, %s8
  %s11 = scalar_select 0, %s10, %s8
  $region1: #{tpu_custom_call.1} parent=0
    #allocation2 [shape = 'u8[4096]{0}', space=vmem, size = 0x1000, scoped, tag = 'input window, operand 0, single buffered']
    #allocation3 [shape = 's32[1]{0}', space=sflag, size = 0x4, scoped, tag = 'scoped memory for tpu_custom_call.1']
    #allocation4 [shape = 's32[1]{0}', space=sflag, size = 0x4, scoped, tag = 'scoped memory for tpu_custom_call.1']
    #allocation5 [shape = 'u8[131072]{0}', space=vmem, size = 0x20000, scoped, tag = 'input window, operand 1, single buffered']
    #allocation6 [shape = 's32[1]{0}', space=sflag, size = 0x4, scoped, tag = 'scoped memory for tpu_custom_call.1']
    #allocation7 [shape = 'u8[2048]{0}', space=vmem, size = 0x800, scoped, tag = 'input window, operand 2, single buffered']
    #allocation8 [shape = 'u8[262144]{0}', space=vmem, size = 0x40000, scoped, tag = 'input window, operand 3, single buffered']
    #allocation9 [shape = 's32[1]{0}', space=sflag, size = 0x4, scoped, tag = 'scoped memory for tpu_custom_call.1']
    #allocation10 [shape = 'u8[131072]{0}', space=vmem, size = 0x20000, scoped, tag = 'input window, operand 5, single buffered']
    #allocation11 [shape = 'u8[512]{0}', space=vmem, size = 0x400, scoped, tag = 'output window, operand 0, single buffered']
    %12 = vsyncpa [#allocation3], 0
    %13 = vsyncpa [#allocation6], 0
    %14 = vsyncpa [#allocation9], 0
    %15 = vsyncpa [#allocation4], 0
    // Predicated region
    $region2: #{tpu_custom_call.1} parent=1 // pred_check
      _
    $region3: #{tpu_custom_call.1} parent=1 // pred_check_branch
      %17 = sbr.rel (0) target = $region5
    $region4: #{tpu_custom_call.1} parent=1 // pred_region
      %s19 = ssub.s32 128, 128
      %20 = vsyncadd [#allocation3], %s19
      %s22 = sshll.u32 [#allocation2], 4
      %s23 = int_to_ptr.vmem [resolvable:$true] %s22
      %25 = dma.hbm_to_vmem [thread:$0]  %s0, 128, %s23, [#allocation3]
    $region5: #{tpu_custom_call.1} parent=1 // pred_fallthru
      _
    // Predicated region
    $region6: #{tpu_custom_call.1} parent=1 // pred_check
      _
    $region7: #{tpu_custom_call.1} parent=1 // pred_check_branch
      %27 = sbr.rel (0) target = $region9
    $region8: #{tpu_custom_call.1} parent=1 // pred_region
      %s29 = ssub.s32 4096, 4096
      %30 = vsyncadd [#allocation6], %s29
      %s31 = sshll.u32 [#allocation5], 4
      %s32 = int_to_ptr.vmem [resolvable:$true] %s31
      %37 = dma.hbm_to_vmem [thread:$0]  %s1, 4096, %s32, [#allocation6], 256, 256, 16
    $region9: #{tpu_custom_call.1} parent=1 // pred_fallthru
      _
    // Predicated region
    $region10: #{tpu_custom_call.1} parent=1 // pred_check
      _
    $region11: #{tpu_custom_call.1} parent=1 // pred_check_branch
      %39 = sbr.rel (0) target = $region13
    $region12: #{tpu_custom_call.1} parent=1 // pred_region
      %s41 = ssub.s32 64, 64
      %42 = vsyncadd [#allocation6], %s41
      %s44 = sshll.u32 [#allocation7], 4
      %s45 = int_to_ptr.vmem [resolvable:$true] %s44
      %47 = dma.hbm_to_vmem [thread:$0]  %s2, 64, %s45, [#allocation6]
    $region13: #{tpu_custom_call.1} parent=1 // pred_fallthru
      _
    // Predicated region
    $region14: #{tpu_custom_call.1} parent=1 // pred_check
      _
    $region15: #{tpu_custom_call.1} parent=1 // pred_check_branch
      %49 = sbr.rel (0) target = $region17
    $region16: #{tpu_custom_call.1} parent=1 // pred_region
      %s51 = ssub.s32 8192, 8192
      %52 = vsyncadd [#allocation9], %s51
      %s53 = sshll.u32 [#allocation8], 4
      %s54 = int_to_ptr.vmem [resolvable:$true] %s53
      %59 = dma.hbm_to_vmem [thread:$0]  %s3, 8192, %s54, [#allocation9], 128, 128, 8
    $region17: #{tpu_custom_call.1} parent=1 // pred_fallthru
      _
    // Predicated region
    $region18: #{tpu_custom_call.1} parent=1 // pred_check
      _
    $region19: #{tpu_custom_call.1} parent=1 // pred_check_branch
      %61 = sbr.rel (0) target = $region21
    $region20: #{tpu_custom_call.1} parent=1 // pred_region
      _
    $region21: #{tpu_custom_call.1} parent=1 // pred_fallthru
      _
    // Predicated region
    $region22: #{tpu_custom_call.1} parent=1 // pred_check
      _
    $region23: #{tpu_custom_call.1} parent=1 // pred_check_branch
      %63 = sbr.rel (0) target = $region25
    $region24: #{tpu_custom_call.1} parent=1 // pred_region
      %s65 = ssub.s32 4096, 4096
      %66 = vsyncadd [#allocation9], %s65
      %s67 = sshll.u32 [#allocation10], 4
      %s68 = int_to_ptr.vmem [resolvable:$true] %s67
      %73 = dma.hbm_to_vmem [thread:$0]  %s5, 4096, %s68, [#allocation9], 128, 128, 8
    $region25: #{tpu_custom_call.1} parent=1 // pred_fallthru
      _
    // Predicated region
    $region26: #{tpu_custom_call.1} parent=1 // pred_check
      _
    $region27: #{tpu_custom_call.1} parent=1 // pred_check_branch
      %75 = sbr.rel (0) target = $region29
    $region28: #{tpu_custom_call.1} parent=1 // pred_region
      _
    $region29: #{tpu_custom_call.1} parent=1 // pred_fallthru
      _
    // Predicated region
    $region30: #{tpu_custom_call.1} parent=1 // pred_check
      _
    $region31: #{tpu_custom_call.1} parent=1 // pred_check_branch
      %77 = sbr.rel (0) target = $region33
    $region32: #{tpu_custom_call.1} parent=1 // pred_region
      %78 = dma.done [#allocation3], 128
    $region33: #{tpu_custom_call.1} parent=1 // pred_fallthru
      _
    // Predicated region
    $region34: #{tpu_custom_call.1} parent=1 // pred_check
      _
    $region35: #{tpu_custom_call.1} parent=1 // pred_check_branch
      %80 = sbr.rel (0) target = $region37
    $region36: #{tpu_custom_call.1} parent=1 // pred_region
      %81 = dma.done [#allocation6], 4096
    $region37: #{tpu_custom_call.1} parent=1 // pred_fallthru
      _
    // Predicated region
    $region38: #{tpu_custom_call.1} parent=1 // pred_check
      _
    $region39: #{tpu_custom_call.1} parent=1 // pred_check_branch
      %83 = sbr.rel (0) target = $region41
    $region40: #{tpu_custom_call.1} parent=1 // pred_region
      %84 = dma.done [#allocation6], 64
    $region41: #{tpu_custom_call.1} parent=1 // pred_fallthru
      _
    // Predicated region
    $region42: #{tpu_custom_call.1} parent=1 // pred_check
      _
    $region43: #{tpu_custom_call.1} parent=1 // pred_check_branch
      %86 = sbr.rel (0) target = $region45
    $region44: #{tpu_custom_call.1} parent=1 // pred_region
      %87 = dma.done [#allocation9], 8192
    $region45: #{tpu_custom_call.1} parent=1 // pred_fallthru
      _
    // Predicated region
    $region46: #{tpu_custom_call.1} parent=1 // pred_check
      _
    $region47: #{tpu_custom_call.1} parent=1 // pred_check_branch
      %89 = sbr.rel (0) target = $region49
    $region48: #{tpu_custom_call.1} parent=1 // pred_region
      %90 = dma.done [#allocation9], 4096
    $region49: #{tpu_custom_call.1} parent=1 // pred_fallthru
      _
    %v93 = vld [vmem:[#allocation2] sm:$0xff]
    %v94 = vpack.c.bf16 %v93, %v93
    %v95 = vld [vmem:[#allocation5] sm:$0xff]
    %v96 = vld [vmem:[#allocation5 + $0x8] sm:$0xff]
    %v97 = vld [vmem:[#allocation5 + $0x10] sm:$0xff]
    %v98 = vld [vmem:[#allocation5 + $0x18] sm:$0xff]
    %v99 = vld [vmem:[#allocation5 + $0x20] sm:$0xff]
    %v100 = vld [vmem:[#allocation5 + $0x28] sm:$0xff]
    %v101 = vld [vmem:[#allocation5 + $0x30] sm:$0xff]
    %v102 = vld [vmem:[#allocation5 + $0x38] sm:$0xff]
    %v103 = vld [vmem:[#allocation5 + $0x40] sm:$0xff]
    %v104 = vld [vmem:[#allocation5 + $0x48] sm:$0xff]
    %v105 = vld [vmem:[#allocation5 + $0x50] sm:$0xff]
    %v106 = vld [vmem:[#allocation5 + $0x58] sm:$0xff]
    %v107 = vld [vmem:[#allocation5 + $0x60] sm:$0xff]
    %v108 = vld [vmem:[#allocation5 + $0x68] sm:$0xff]
    %v109 = vld [vmem:[#allocation5 + $0x70] sm:$0xff]
    %v110 = vld [vmem:[#allocation5 + $0x78] sm:$0xff]
    %v111 = vld [vmem:[#allocation5 + $0x80] sm:$0xff]
    %v112 = vld [vmem:[#allocation5 + $0x88] sm:$0xff]
    %v113 = vld [vmem:[#allocation5 + $0x90] sm:$0xff]
    %v114 = vld [vmem:[#allocation5 + $0x98] sm:$0xff]
    %v115 = vld [vmem:[#allocation5 + $0xa0] sm:$0xff]
    %v116 = vld [vmem:[#allocation5 + $0xa8] sm:$0xff]
    %v117 = vld [vmem:[#allocation5 + $0xb0] sm:$0xff]
    %v118 = vld [vmem:[#allocation5 + $0xb8] sm:$0xff]
    %v119 = vld [vmem:[#allocation5 + $0xc0] sm:$0xff]
    %v120 = vld [vmem:[#allocation5 + $0xc8] sm:$0xff]
    %v121 = vld [vmem:[#allocation5 + $0xd0] sm:$0xff]
    %v122 = vld [vmem:[#allocation5 + $0xd8] sm:$0xff]
    %v123 = vld [vmem:[#allocation5 + $0xe0] sm:$0xff]
    %v124 = vld [vmem:[#allocation5 + $0xe8] sm:$0xff]
    %v125 = vld [vmem:[#allocation5 + $0xf0] sm:$0xff]
    %v126 = vld [vmem:[#allocation5 + $0xf8] sm:$0xff]
    %v127 = vld [vmem:[#allocation7] sm:$0xf]
    %v129 = vlaneseq
    %v130 = vshrl.u32 %v129, 7
    %v131 = vsub.s32 0, %v130
    %v132 = vrot.slane %v127, %v131
    %v133 = vlaneseq
    %v134 = vshrl.u32 %v133, 7
    %v135 = vsub.s32 1, %v134
    %v136 = vrot.slane %v127, %v135
    %v137 = vlaneseq
    %v138 = vshrl.u32 %v137, 7
    %v139 = vsub.s32 2, %v138
    %v140 = vrot.slane %v127, %v139
    %v141 = vlaneseq
    %v142 = vshrl.u32 %v141, 7
    %v143 = vsub.s32 3, %v142
    %v144 = vrot.slane %v127, %v143
    %v181 = vunpack.c.l.b16 %v95
    %v182 = vunpack.c.h.b16 %v95
    %v183 = vunpack.c.l.b16 %v96
    %v184 = vunpack.c.h.b16 %v96
    %v185 = vunpack.c.l.b16 %v97
    %v186 = vunpack.c.h.b16 %v97
    %v187 = vunpack.c.l.b16 %v98
    %v188 = vunpack.c.h.b16 %v98
    %v189 = vunpack.c.l.b16 %v99
    %v190 = vunpack.c.h.b16 %v99
    %v191 = vunpack.c.l.b16 %v100
    %v192 = vunpack.c.h.b16 %v100
    %v193 = vunpack.c.l.b16 %v101
    %v194 = vunpack.c.h.b16 %v101
    %v195 = vunpack.c.l.b16 %v102
    %v196 = vunpack.c.h.b16 %v102
    %v197 = vunpack.c.l.b16 %v103
    %v198 = vunpack.c.h.b16 %v103
    %v199 = vunpack.c.l.b16 %v104
    %v200 = vunpack.c.h.b16 %v104
    %v201 = vunpack.c.l.b16 %v105
    %v202 = vunpack.c.h.b16 %v105
    %v203 = vunpack.c.l.b16 %v106
    %v204 = vunpack.c.h.b16 %v106
    %v205 = vunpack.c.l.b16 %v107
    %v206 = vunpack.c.h.b16 %v107
    %v207 = vunpack.c.l.b16 %v108
    %v208 = vunpack.c.h.b16 %v108
    %v209 = vunpack.c.l.b16 %v109
    %v210 = vunpack.c.h.b16 %v109
    %v211 = vunpack.c.l.b16 %v110
    %v212 = vunpack.c.h.b16 %v110
    %v213 = vunpack.c.l.b16 %v111
    %v214 = vunpack.c.h.b16 %v111
    %v215 = vunpack.c.l.b16 %v112
    %v216 = vunpack.c.h.b16 %v112
    %v217 = vunpack.c.l.b16 %v113
    %v218 = vunpack.c.h.b16 %v113
    %v219 = vunpack.c.l.b16 %v114
    %v220 = vunpack.c.h.b16 %v114
    %v221 = vunpack.c.l.b16 %v115
    %v222 = vunpack.c.h.b16 %v115
    %v223 = vunpack.c.l.b16 %v116
    %v224 = vunpack.c.h.b16 %v116
    %v225 = vunpack.c.l.b16 %v117
    %v226 = vunpack.c.h.b16 %v117
    %v227 = vunpack.c.l.b16 %v118
    %v228 = vunpack.c.h.b16 %v118
    %v229 = vunpack.c.l.b16 %v119
    %v230 = vunpack.c.h.b16 %v119
    %v231 = vunpack.c.l.b16 %v120
    %v232 = vunpack.c.h.b16 %v120
    %v233 = vunpack.c.l.b16 %v121
    %v234 = vunpack.c.h.b16 %v121
    %v235 = vunpack.c.l.b16 %v122
    %v236 = vunpack.c.h.b16 %v122
    %v237 = vunpack.c.l.b16 %v123
    %v238 = vunpack.c.h.b16 %v123
    %v239 = vunpack.c.l.b16 %v124
    %v240 = vunpack.c.h.b16 %v124
    %v241 = vunpack.c.l.b16 %v125
    %v242 = vunpack.c.h.b16 %v125
    %v243 = vunpack.c.l.b16 %v126
    %v244 = vunpack.c.h.b16 %v126
    %v245 = vpack.c.b16 %v185, %v181
    %v246 = vpack.c.b16 %v186, %v182
    %v247 = vpack.c.b16 %v187, %v183
    %v248 = vpack.c.b16 %v188, %v184
    %v249 = vpack.c.b16 %v193, %v189
    %v250 = vpack.c.b16 %v194, %v190
    %v251 = vpack.c.b16 %v195, %v191
    %v252 = vpack.c.b16 %v196, %v192
    %v253 = vpack.c.b16 %v201, %v197
    %v254 = vpack.c.b16 %v202, %v198
    %v255 = vpack.c.b16 %v203, %v199
    %v256 = vpack.c.b16 %v204, %v200
    %v257 = vpack.c.b16 %v209, %v205
    %v258 = vpack.c.b16 %v210, %v206
    %v259 = vpack.c.b16 %v211, %v207
    %v260 = vpack.c.b16 %v212, %v208
    %v261 = vpack.c.b16 %v217, %v213
    %v262 = vpack.c.b16 %v218, %v214
    %v263 = vpack.c.b16 %v219, %v215
    %v264 = vpack.c.b16 %v220, %v216
    %v265 = vpack.c.b16 %v225, %v221
    %v266 = vpack.c.b16 %v226, %v222
    %v267 = vpack.c.b16 %v227, %v223
    %v268 = vpack.c.b16 %v228, %v224
    %v269 = vpack.c.b16 %v233, %v229
    %v270 = vpack.c.b16 %v234, %v230
    %v271 = vpack.c.b16 %v235, %v231
    %v272 = vpack.c.b16 %v236, %v232
    %v273 = vpack.c.b16 %v241, %v237
    %v274 = vpack.c.b16 %v242, %v238
    %v275 = vpack.c.b16 %v243, %v239
    %v276 = vpack.c.b16 %v244, %v240
    %309 = vmatprep.subr.bf16.mxu0 %v274
    %310 = vmatpush1.bf16.msra.mxu0 %v273
    %311 = vmatprep.subr.bf16.mxu0 %v270
    %312 = vmatpush1.bf16.msra.mxu0 %v269
    %313 = vmatprep.subr.bf16.mxu0 %v266
    %314 = vmatpush1.bf16.msra.mxu0 %v265
    %315 = vmatprep.subr.bf16.mxu0 %v262
    %316 = vmatpush1.bf16.msra.mxu0 %v261
    %317 = vmatprep.subr.bf16.mxu0 %v258
    %318 = vmatpush1.bf16.msra.mxu0 %v257
    %319 = vmatprep.subr.bf16.mxu0 %v254
    %320 = vmatpush1.bf16.msra.mxu0 %v253
    %321 = vmatprep.subr.bf16.mxu0 %v250
    %322 = vmatpush1.bf16.msra.mxu0 %v249
    %323 = vmatprep.subr.bf16.mxu0 %v246
    %324 = vmatpush1.bf16.msra.mxu0 %v245
    %325 = vmatprep.subr.bf16.mxu0 0
    %326 = vmatpush2.bf16.msra.mxu0 0
    %327 = vmatprep.subr.bf16.mxu0 0
    %328 = vmatpush2.bf16.msra.mxu0 0
    %329 = vmatprep.subr.bf16.mxu0 0
    %330 = vmatpush2.bf16.msra.mxu0 0
    %331 = vmatprep.subr.bf16.mxu0 0
    %332 = vmatpush2.bf16.msra.mxu0 0
    %333 = vmatprep.subr.bf16.mxu0 0
    %334 = vmatpush2.bf16.msra.mxu0 0
    %335 = vmatprep.subr.bf16.mxu0 0
    %336 = vmatpush2.bf16.msra.mxu0 0
    %337 = vmatprep.subr.bf16.mxu0 0
    %338 = vmatpush2.bf16.msra.mxu0 0
    %339 = vmatprep.subr.bf16.mxu0 0
    %340 = vmatpush2.bf16.msra.mxu0 0
    %341 = vmatprep.mubr.bf16.mxu0 0
    %342 = vmatmul.mubr.bf16.gmra.mxu0 %v94
    %v343 = vpop.f32.mrf.mxu0
    %v344 = vadd.f32 %v132, %v343
    %v345 = vpop.f32.mrf.mxu0
    %v346 = vadd.f32 %v136, %v345
    %v347 = vpop.f32.mrf.mxu0
    %v348 = vpop.f32.mrf.mxu0
    %349 = vdwg.mxu0
    %350 = vmatprep.subr.bf16.mxu0 %v276
    %351 = vmatpush1.bf16.msra.mxu0 %v275
    %352 = vmatprep.subr.bf16.mxu0 %v272
    %353 = vmatpush1.bf16.msra.mxu0 %v271
    %354 = vmatprep.subr.bf16.mxu0 %v268
    %355 = vmatpush1.bf16.msra.mxu0 %v267
    %356 = vmatprep.subr.bf16.mxu0 %v264
    %357 = vmatpush1.bf16.msra.mxu0 %v263
    %358 = vmatprep.subr.bf16.mxu0 %v260
    %359 = vmatpush1.bf16.msra.mxu0 %v259
    %360 = vmatprep.subr.bf16.mxu0 %v256
    %361 = vmatpush1.bf16.msra.mxu0 %v255
    %362 = vmatprep.subr.bf16.mxu0 %v252
    %363 = vmatpush1.bf16.msra.mxu0 %v251
    %364 = vmatprep.subr.bf16.mxu0 %v248
    %365 = vmatpush1.bf16.msra.mxu0 %v247
    %366 = vmatprep.subr.bf16.mxu0 0
    %367 = vmatpush2.bf16.msra.mxu0 0
    %368 = vmatprep.subr.bf16.mxu0 0
    %369 = vmatpush2.bf16.msra.mxu0 0
    %370 = vmatprep.subr.bf16.mxu0 0
    %371 = vmatpush2.bf16.msra.mxu0 0
    %372 = vmatprep.subr.bf16.mxu0 0
    %373 = vmatpush2.bf16.msra.mxu0 0
    %374 = vmatprep.subr.bf16.mxu0 0
    %375 = vmatpush2.bf16.msra.mxu0 0
    %376 = vmatprep.subr.bf16.mxu0 0
    %377 = vmatpush2.bf16.msra.mxu0 0
    %378 = vmatprep.subr.bf16.mxu0 0
    %379 = vmatpush2.bf16.msra.mxu0 0
    %380 = vmatprep.subr.bf16.mxu0 0
    %381 = vmatpush2.bf16.msra.mxu0 0
    %382 = vmatprep.mubr.bf16.mxu0 0
    %383 = vmatmul.mubr.bf16.gmra.mxu0 %v94
    %v384 = vpop.f32.mrf.mxu0
    %v385 = vadd.f32 %v140, %v384
    %v386 = vpop.f32.mrf.mxu0
    %v387 = vadd.f32 %v144, %v386
    %v388 = vpop.f32.mrf.mxu0
    %v389 = vpop.f32.mrf.mxu0
    %390 = vdwg.mxu0
    %v391 = vpack.c.bf16 %v344, %v344
    %v392 = vpack.c.bf16 %v346, %v346
    %v393 = vpack.c.bf16 %v385, %v385
    %v394 = vpack.c.bf16 %v387, %v387
    %vm395 = vcmp.gt.bf16.partialorder %v391, 0
    %vm396 = vcmp.gt.bf16.partialorder %v392, 0
    %vm397 = vcmp.gt.bf16.partialorder %v393, 0
    %vm398 = vcmp.gt.bf16.partialorder %v394, 0
    %v399 = vmul.bf16 %v391, 1009007652
    %v400 = vmul.bf16 %v392, 1009007652
    %v401 = vmul.bf16 %v393, 1009007652
    %v402 = vmul.bf16 %v394, 1009007652
    %v403 = vsel %vm395, %v391, %v399
    %v404 = vsel %vm396, %v392, %v400
    %v405 = vsel %vm397, %v393, %v401
    %v406 = vsel %vm398, %v394, %v402
    %v407 = vld [vmem:[#allocation8] sm:$0xff]
    %v408 = vld [vmem:[#allocation8 + $0x8] sm:$0xff]
    %v409 = vld [vmem:[#allocation8 + $0x10] sm:$0xff]
    %v410 = vld [vmem:[#allocation8 + $0x18] sm:$0xff]
    %v411 = vld [vmem:[#allocation8 + $0x20] sm:$0xff]
    %v412 = vld [vmem:[#allocation8 + $0x28] sm:$0xff]
    %v413 = vld [vmem:[#allocation8 + $0x30] sm:$0xff]
    %v414 = vld [vmem:[#allocation8 + $0x38] sm:$0xff]
    %v415 = vld [vmem:[#allocation8 + $0x40] sm:$0xff]
    %v416 = vld [vmem:[#allocation8 + $0x48] sm:$0xff]
    %v417 = vld [vmem:[#allocation8 + $0x50] sm:$0xff]
    %v418 = vld [vmem:[#allocation8 + $0x58] sm:$0xff]
    %v419 = vld [vmem:[#allocation8 + $0x60] sm:$0xff]
    %v420 = vld [vmem:[#allocation8 + $0x68] sm:$0xff]
    %v421 = vld [vmem:[#allocation8 + $0x70] sm:$0xff]
    %v422 = vld [vmem:[#allocation8 + $0x78] sm:$0xff]
    %v423 = vld [vmem:[#allocation8 + $0x80] sm:$0xff]
    %v424 = vld [vmem:[#allocation8 + $0x88] sm:$0xff]
    %v425 = vld [vmem:[#allocation8 + $0x90] sm:$0xff]
    %v426 = vld [vmem:[#allocation8 + $0x98] sm:$0xff]
    %v427 = vld [vmem:[#allocation8 + $0xa0] sm:$0xff]
    %v428 = vld [vmem:[#allocation8 + $0xa8] sm:$0xff]
    %v429 = vld [vmem:[#allocation8 + $0xb0] sm:$0xff]
    %v430 = vld [vmem:[#allocation8 + $0xb8] sm:$0xff]
    %v431 = vld [vmem:[#allocation8 + $0xc0] sm:$0xff]
    %v432 = vld [vmem:[#allocation8 + $0xc8] sm:$0xff]
    %v433 = vld [vmem:[#allocation8 + $0xd0] sm:$0xff]
    %v434 = vld [vmem:[#allocation8 + $0xd8] sm:$0xff]
    %v435 = vld [vmem:[#allocation8 + $0xe0] sm:$0xff]
    %v436 = vld [vmem:[#allocation8 + $0xe8] sm:$0xff]
    %v437 = vld [vmem:[#allocation8 + $0xf0] sm:$0xff]
    %v438 = vld [vmem:[#allocation8 + $0xf8] sm:$0xff]
    %v439 = vld [vmem:[#allocation8 + $0x100] sm:$0xff]
    %v440 = vld [vmem:[#allocation8 + $0x108] sm:$0xff]
    %v441 = vld [vmem:[#allocation8 + $0x110] sm:$0xff]
    %v442 = vld [vmem:[#allocation8 + $0x118] sm:$0xff]
    %v443 = vld [vmem:[#allocation8 + $0x120] sm:$0xff]
    %v444 = vld [vmem:[#allocation8 + $0x128] sm:$0xff]
    %v445 = vld [vmem:[#allocation8 + $0x130] sm:$0xff]
    %v446 = vld [vmem:[#allocation8 + $0x138] sm:$0xff]
    %v447 = vld [vmem:[#allocation8 + $0x140] sm:$0xff]
    %v448 = vld [vmem:[#allocation8 + $0x148] sm:$0xff]
    %v449 = vld [vmem:[#allocation8 + $0x150] sm:$0xff]
    %v450 = vld [vmem:[#allocation8 + $0x158] sm:$0xff]
    %v451 = vld [vmem:[#allocation8 + $0x160] sm:$0xff]
    %v452 = vld [vmem:[#allocation8 + $0x168] sm:$0xff]
    %v453 = vld [vmem:[#allocation8 + $0x170] sm:$0xff]
    %v454 = vld [vmem:[#allocation8 + $0x178] sm:$0xff]
    %v455 = vld [vmem:[#allocation8 + $0x180] sm:$0xff]
    %v456 = vld [vmem:[#allocation8 + $0x188] sm:$0xff]
    %v457 = vld [vmem:[#allocation8 + $0x190] sm:$0xff]
    %v458 = vld [vmem:[#allocation8 + $0x198] sm:$0xff]
    %v459 = vld [vmem:[#allocation8 + $0x1a0] sm:$0xff]
    %v460 = vld [vmem:[#allocation8 + $0x1a8] sm:$0xff]
    %v461 = vld [vmem:[#allocation8 + $0x1b0] sm:$0xff]
    %v462 = vld [vmem:[#allocation8 + $0x1b8] sm:$0xff]
    %v463 = vld [vmem:[#allocation8 + $0x1c0] sm:$0xff]
    %v464 = vld [vmem:[#allocation8 + $0x1c8] sm:$0xff]
    %v465 = vld [vmem:[#allocation8 + $0x1d0] sm:$0xff]
    %v466 = vld [vmem:[#allocation8 + $0x1d8] sm:$0xff]
    %v467 = vld [vmem:[#allocation8 + $0x1e0] sm:$0xff]
    %v468 = vld [vmem:[#allocation8 + $0x1e8] sm:$0xff]
    %v469 = vld [vmem:[#allocation8 + $0x1f0] sm:$0xff]
    %v470 = vld [vmem:[#allocation8 + $0x1f8] sm:$0xff]
    %v471 = vld [vmem:[%s4] sm:$0x3]
    %v473 = vlaneseq
    %v474 = vshrl.u32 %v473, 7
    %v475 = vsub.s32 0, %v474
    %v476 = vrot.slane %v471, %v475
    %v477 = vlaneseq
    %v478 = vshrl.u32 %v477, 7
    %v479 = vsub.s32 1, %v478
    %v480 = vrot.slane %v471, %v479
    %v547 = vunpack.c.l.b16 %v407
    %v548 = vunpack.c.h.b16 %v407
    %v549 = vunpack.c.l.b16 %v408
    %v550 = vunpack.c.h.b16 %v408
    %v551 = vunpack.c.l.b16 %v409
    %v552 = vunpack.c.h.b16 %v409
    %v553 = vunpack.c.l.b16 %v410
    %v554 = vunpack.c.h.b16 %v410
    %v555 = vunpack.c.l.b16 %v411
    %v556 = vunpack.c.h.b16 %v411
    %v557 = vunpack.c.l.b16 %v412
    %v558 = vunpack.c.h.b16 %v412
    %v559 = vunpack.c.l.b16 %v413
    %v560 = vunpack.c.h.b16 %v413
    %v561 = vunpack.c.l.b16 %v414
    %v562 = vunpack.c.h.b16 %v414
    %v563 = vunpack.c.l.b16 %v415
    %v564 = vunpack.c.h.b16 %v415
    %v565 = vunpack.c.l.b16 %v416
    %v566 = vunpack.c.h.b16 %v416
    %v567 = vunpack.c.l.b16 %v417
    %v568 = vunpack.c.h.b16 %v417
    %v569 = vunpack.c.l.b16 %v418
    %v570 = vunpack.c.h.b16 %v418
    %v571 = vunpack.c.l.b16 %v419
    %v572 = vunpack.c.h.b16 %v419
    %v573 = vunpack.c.l.b16 %v420
    %v574 = vunpack.c.h.b16 %v420
    %v575 = vunpack.c.l.b16 %v421
    %v576 = vunpack.c.h.b16 %v421
    %v577 = vunpack.c.l.b16 %v422
    %v578 = vunpack.c.h.b16 %v422
    %v579 = vunpack.c.l.b16 %v423
    %v580 = vunpack.c.h.b16 %v423
    %v581 = vunpack.c.l.b16 %v424
    %v582 = vunpack.c.h.b16 %v424
    %v583 = vunpack.c.l.b16 %v425
    %v584 = vunpack.c.h.b16 %v425
    %v585 = vunpack.c.l.b16 %v426
    %v586 = vunpack.c.h.b16 %v426
    %v587 = vunpack.c.l.b16 %v427
    %v588 = vunpack.c.h.b16 %v427
    %v589 = vunpack.c.l.b16 %v428
    %v590 = vunpack.c.h.b16 %v428
    %v591 = vunpack.c.l.b16 %v429
    %v592 = vunpack.c.h.b16 %v429
    %v593 = vunpack.c.l.b16 %v430
    %v594 = vunpack.c.h.b16 %v430
    %v595 = vunpack.c.l.b16 %v431
    %v596 = vunpack.c.h.b16 %v431
    %v597 = vunpack.c.l.b16 %v432
    %v598 = vunpack.c.h.b16 %v432
    %v599 = vunpack.c.l.b16 %v433
    %v600 = vunpack.c.h.b16 %v433
    %v601 = vunpack.c.l.b16 %v434
    %v602 = vunpack.c.h.b16 %v434
    %v603 = vunpack.c.l.b16 %v435
    %v604 = vunpack.c.h.b16 %v435
    %v605 = vunpack.c.l.b16 %v436
    %v606 = vunpack.c.h.b16 %v436
    %v607 = vunpack.c.l.b16 %v437
    %v608 = vunpack.c.h.b16 %v437
    %v609 = vunpack.c.l.b16 %v438
    %v610 = vunpack.c.h.b16 %v438
    %v611 = vunpack.c.l.b16 %v439
    %v612 = vunpack.c.h.b16 %v439
    %v613 = vunpack.c.l.b16 %v440
    %v614 = vunpack.c.h.b16 %v440
    %v615 = vunpack.c.l.b16 %v441
    %v616 = vunpack.c.h.b16 %v441
    %v617 = vunpack.c.l.b16 %v442
    %v618 = vunpack.c.h.b16 %v442
    %v619 = vunpack.c.l.b16 %v443
    %v620 = vunpack.c.h.b16 %v443
    %v621 = vunpack.c.l.b16 %v444
    %v622 = vunpack.c.h.b16 %v444
    %v623 = vunpack.c.l.b16 %v445
    %v624 = vunpack.c.h.b16 %v445
    %v625 = vunpack.c.l.b16 %v446
    %v626 = vunpack.c.h.b16 %v446
    %v627 = vunpack.c.l.b16 %v447
    %v628 = vunpack.c.h.b16 %v447
    %v629 = vunpack.c.l.b16 %v448
    %v630 = vunpack.c.h.b16 %v448
    %v631 = vunpack.c.l.b16 %v449
    %v632 = vunpack.c.h.b16 %v449
    %v633 = vunpack.c.l.b16 %v450
    %v634 = vunpack.c.h.b16 %v450
    %v635 = vunpack.c.l.b16 %v451
    %v636 = vunpack.c.h.b16 %v451
    %v637 = vunpack.c.l.b16 %v452
    %v638 = vunpack.c.h.b16 %v452
    %v639 = vunpack.c.l.b16 %v453
    %v640 = vunpack.c.h.b16 %v453
    %v641 = vunpack.c.l.b16 %v454
    %v642 = vunpack.c.h.b16 %v454
    %v643 = vunpack.c.l.b16 %v455
    %v644 = vunpack.c.h.b16 %v455
    %v645 = vunpack.c.l.b16 %v456
    %v646 = vunpack.c.h.b16 %v456
    %v647 = vunpack.c.l.b16 %v457
    %v648 = vunpack.c.h.b16 %v457
    %v649 = vunpack.c.l.b16 %v458
    %v650 = vunpack.c.h.b16 %v458
    %v651 = vunpack.c.l.b16 %v459
    %v652 = vunpack.c.h.b16 %v459
    %v653 = vunpack.c.l.b16 %v460
    %v654 = vunpack.c.h.b16 %v460
    %v655 = vunpack.c.l.b16 %v461
    %v656 = vunpack.c.h.b16 %v461
    %v657 = vunpack.c.l.b16 %v462
    %v658 = vunpack.c.h.b16 %v462
    %v659 = vunpack.c.l.b16 %v463
    %v660 = vunpack.c.h.b16 %v463
    %v661 = vunpack.c.l.b16 %v464
    %v662 = vunpack.c.h.b16 %v464
    %v663 = vunpack.c.l.b16 %v465
    %v664 = vunpack.c.h.b16 %v465
    %v665 = vunpack.c.l.b16 %v466
    %v666 = vunpack.c.h.b16 %v466
    %v667 = vunpack.c.l.b16 %v467
    %v668 = vunpack.c.h.b16 %v467
    %v669 = vunpack.c.l.b16 %v468
    %v670 = vunpack.c.h.b16 %v468
    %v671 = vunpack.c.l.b16 %v469
    %v672 = vunpack.c.h.b16 %v469
    %v673 = vunpack.c.l.b16 %v470
    %v674 = vunpack.c.h.b16 %v470
    %v675 = vpack.c.b16 %v549, %v547
    %v676 = vpack.c.b16 %v550, %v548
    %v677 = vpack.c.b16 %v553, %v551
    %v678 = vpack.c.b16 %v554, %v552
    %v679 = vpack.c.b16 %v557, %v555
    %v680 = vpack.c.b16 %v558, %v556
    %v681 = vpack.c.b16 %v561, %v559
    %v682 = vpack.c.b16 %v562, %v560
    %v683 = vpack.c.b16 %v565, %v563
    %v684 = vpack.c.b16 %v566, %v564
    %v685 = vpack.c.b16 %v569, %v567
    %v686 = vpack.c.b16 %v570, %v568
    %v687 = vpack.c.b16 %v573, %v571
    %v688 = vpack.c.b16 %v574, %v572
    %v689 = vpack.c.b16 %v577, %v575
    %v690 = vpack.c.b16 %v578, %v576
    %v691 = vpack.c.b16 %v581, %v579
    %v692 = vpack.c.b16 %v582, %v580
    %v693 = vpack.c.b16 %v585, %v583
    %v694 = vpack.c.b16 %v586, %v584
    %v695 = vpack.c.b16 %v589, %v587
    %v696 = vpack.c.b16 %v590, %v588
    %v697 = vpack.c.b16 %v593, %v591
    %v698 = vpack.c.b16 %v594, %v592
    %v699 = vpack.c.b16 %v597, %v595
    %v700 = vpack.c.b16 %v598, %v596
    %v701 = vpack.c.b16 %v601, %v599
    %v702 = vpack.c.b16 %v602, %v600
    %v703 = vpack.c.b16 %v605, %v603
    %v704 = vpack.c.b16 %v606, %v604
    %v705 = vpack.c.b16 %v609, %v607
    %v706 = vpack.c.b16 %v610, %v608
    %v707 = vpack.c.b16 %v613, %v611
    %v708 = vpack.c.b16 %v614, %v612
    %v709 = vpack.c.b16 %v617, %v615
    %v710 = vpack.c.b16 %v618, %v616
    %v711 = vpack.c.b16 %v621, %v619
    %v712 = vpack.c.b16 %v622, %v620
    %v713 = vpack.c.b16 %v625, %v623
    %v714 = vpack.c.b16 %v626, %v624
    %v715 = vpack.c.b16 %v629, %v627
    %v716 = vpack.c.b16 %v630, %v628
    %v717 = vpack.c.b16 %v633, %v631
    %v718 = vpack.c.b16 %v634, %v632
    %v719 = vpack.c.b16 %v637, %v635
    %v720 = vpack.c.b16 %v638, %v636
    %v721 = vpack.c.b16 %v641, %v639
    %v722 = vpack.c.b16 %v642, %v640
    %v723 = vpack.c.b16 %v645, %v643
    %v724 = vpack.c.b16 %v646, %v644
    %v725 = vpack.c.b16 %v649, %v647
    %v726 = vpack.c.b16 %v650, %v648
    %v727 = vpack.c.b16 %v653, %v651
    %v728 = vpack.c.b16 %v654, %v652
    %v729 = vpack.c.b16 %v657, %v655
    %v730 = vpack.c.b16 %v658, %v656
    %v731 = vpack.c.b16 %v661, %v659
    %v732 = vpack.c.b16 %v662, %v660
    %v733 = vpack.c.b16 %v665, %v663
    %v734 = vpack.c.b16 %v666, %v664
    %v735 = vpack.c.b16 %v669, %v667
    %v736 = vpack.c.b16 %v670, %v668
    %v737 = vpack.c.b16 %v673, %v671
    %v738 = vpack.c.b16 %v674, %v672
    %803 = vmatprep.subr.bf16.mxu0 %v690
    %804 = vmatpush1.bf16.msra.mxu0 %v689
    %805 = vmatprep.subr.bf16.mxu0 %v688
    %806 = vmatpush1.bf16.msra.mxu0 %v687
    %807 = vmatprep.subr.bf16.mxu0 %v686
    %808 = vmatpush1.bf16.msra.mxu0 %v685
    %809 = vmatprep.subr.bf16.mxu0 %v684
    %810 = vmatpush1.bf16.msra.mxu0 %v683
    %811 = vmatprep.subr.bf16.mxu0 %v682
    %812 = vmatpush1.bf16.msra.mxu0 %v681
    %813 = vmatprep.subr.bf16.mxu0 %v680
    %814 = vmatpush1.bf16.msra.mxu0 %v679
    %815 = vmatprep.subr.bf16.mxu0 %v678
    %816 = vmatpush1.bf16.msra.mxu0 %v677
    %817 = vmatprep.subr.bf16.mxu0 %v676
    %818 = vmatpush1.bf16.msra.mxu0 %v675
    %819 = vmatprep.subr.bf16.mxu0 %v706
    %820 = vmatpush2.bf16.msra.mxu0 %v705
    %821 = vmatprep.subr.bf16.mxu0 %v704
    %822 = vmatpush2.bf16.msra.mxu0 %v703
    %823 = vmatprep.subr.bf16.mxu0 %v702
    %824 = vmatpush2.bf16.msra.mxu0 %v701
    %825 = vmatprep.subr.bf16.mxu0 %v700
    %826 = vmatpush2.bf16.msra.mxu0 %v699
    %827 = vmatprep.subr.bf16.mxu0 %v698
    %828 = vmatpush2.bf16.msra.mxu0 %v697
    %829 = vmatprep.subr.bf16.mxu0 %v696
    %830 = vmatpush2.bf16.msra.mxu0 %v695
    %831 = vmatprep.subr.bf16.mxu0 %v694
    %832 = vmatpush2.bf16.msra.mxu0 %v693
    %833 = vmatprep.subr.bf16.mxu0 %v692
    %834 = vmatpush2.bf16.msra.mxu0 %v691
    %835 = vmatprep.mubr.bf16.mxu0 %v404
    %836 = vmatmul.mubr.bf16.gmra.mxu0 %v403
    %v837 = vpop.f32.mrf.mxu0
    %v838 = vadd.f32 %v476, %v837
    %v839 = vpop.f32.mrf.mxu0
    %v840 = vadd.f32 %v480, %v839
    %v841 = vpop.f32.mrf.mxu0
    %v842 = vpop.f32.mrf.mxu0
    %843 = vdwg.mxu0
    %844 = vmatprep.subr.bf16.mxu0 %v722
    %845 = vmatpush1.bf16.msra.mxu0 %v721
    %846 = vmatprep.subr.bf16.mxu0 %v720
    %847 = vmatpush1.bf16.msra.mxu0 %v719
    %848 = vmatprep.subr.bf16.mxu0 %v718
    %849 = vmatpush1.bf16.msra.mxu0 %v717
    %850 = vmatprep.subr.bf16.mxu0 %v716
    %851 = vmatpush1.bf16.msra.mxu0 %v715
    %852 = vmatprep.subr.bf16.mxu0 %v714
    %853 = vmatpush1.bf16.msra.mxu0 %v713
    %854 = vmatprep.subr.bf16.mxu0 %v712
    %855 = vmatpush1.bf16.msra.mxu0 %v711
    %856 = vmatprep.subr.bf16.mxu0 %v710
    %857 = vmatpush1.bf16.msra.mxu0 %v709
    %858 = vmatprep.subr.bf16.mxu0 %v708
    %859 = vmatpush1.bf16.msra.mxu0 %v707
    %860 = vmatprep.subr.bf16.mxu0 %v738
    %861 = vmatpush2.bf16.msra.mxu0 %v737
    %862 = vmatprep.subr.bf16.mxu0 %v736
    %863 = vmatpush2.bf16.msra.mxu0 %v735
    %864 = vmatprep.subr.bf16.mxu0 %v734
    %865 = vmatpush2.bf16.msra.mxu0 %v733
    %866 = vmatprep.subr.bf16.mxu0 %v732
    %867 = vmatpush2.bf16.msra.mxu0 %v731
    %868 = vmatprep.subr.bf16.mxu0 %v730
    %869 = vmatpush2.bf16.msra.mxu0 %v729
    %870 = vmatprep.subr.bf16.mxu0 %v728
    %871 = vmatpush2.bf16.msra.mxu0 %v727
    %872 = vmatprep.subr.bf16.mxu0 %v726
    %873 = vmatpush2.bf16.msra.mxu0 %v725
    %874 = vmatprep.subr.bf16.mxu0 %v724
    %875 = vmatpush2.bf16.msra.mxu0 %v723
    %876 = vmatprep.mubr.bf16.mxu0 %v406
    %877 = vmatmul.mubr.bf16.gmra.mxu0 %v405
    %v878 = vpop.f32.mrf.mxu0
    %v879 = vadd.f32 %v838, %v878
    %v880 = vpop.f32.mrf.mxu0
    %v881 = vadd.f32 %v840, %v880
    %v882 = vpop.f32.mrf.mxu0
    %v883 = vpop.f32.mrf.mxu0
    %884 = vdwg.mxu0
    %v885 = vpack.c.bf16 %v879, %v879
    %v886 = vpack.c.bf16 %v881, %v881
    %vm887 = vcmp.gt.bf16.partialorder %v885, 0
    %vm888 = vcmp.gt.bf16.partialorder %v886, 0
    %v889 = vmul.bf16 %v885, 1009007652
    %v890 = vmul.bf16 %v886, 1009007652
    %v891 = vsel %vm887, %v885, %v889
    %v892 = vsel %vm888, %v886, %v890
    %v893 = vld [vmem:[#allocation10] sm:$0xff]
    %v894 = vld [vmem:[#allocation10 + $0x8] sm:$0xff]
    %v895 = vld [vmem:[#allocation10 + $0x10] sm:$0xff]
    %v896 = vld [vmem:[#allocation10 + $0x18] sm:$0xff]
    %v897 = vld [vmem:[#allocation10 + $0x20] sm:$0xff]
    %v898 = vld [vmem:[#allocation10 + $0x28] sm:$0xff]
    %v899 = vld [vmem:[#allocation10 + $0x30] sm:$0xff]
    %v900 = vld [vmem:[#allocation10 + $0x38] sm:$0xff]
    %v901 = vld [vmem:[#allocation10 + $0x40] sm:$0xff]
    %v902 = vld [vmem:[#allocation10 + $0x48] sm:$0xff]
    %v903 = vld [vmem:[#allocation10 + $0x50] sm:$0xff]
    %v904 = vld [vmem:[#allocation10 + $0x58] sm:$0xff]
    %v905 = vld [vmem:[#allocation10 + $0x60] sm:$0xff]
    %v906 = vld [vmem:[#allocation10 + $0x68] sm:$0xff]
    %v907 = vld [vmem:[#allocation10 + $0x70] sm:$0xff]
    %v908 = vld [vmem:[#allocation10 + $0x78] sm:$0xff]
    %v909 = vld [vmem:[#allocation10 + $0x80] sm:$0xff]
    %v910 = vld [vmem:[#allocation10 + $0x88] sm:$0xff]
    %v911 = vld [vmem:[#allocation10 + $0x90] sm:$0xff]
    %v912 = vld [vmem:[#allocation10 + $0x98] sm:$0xff]
    %v913 = vld [vmem:[#allocation10 + $0xa0] sm:$0xff]
    %v914 = vld [vmem:[#allocation10 + $0xa8] sm:$0xff]
    %v915 = vld [vmem:[#allocation10 + $0xb0] sm:$0xff]
    %v916 = vld [vmem:[#allocation10 + $0xb8] sm:$0xff]
    %v917 = vld [vmem:[#allocation10 + $0xc0] sm:$0xff]
    %v918 = vld [vmem:[#allocation10 + $0xc8] sm:$0xff]
    %v919 = vld [vmem:[#allocation10 + $0xd0] sm:$0xff]
    %v920 = vld [vmem:[#allocation10 + $0xd8] sm:$0xff]
    %v921 = vld [vmem:[#allocation10 + $0xe0] sm:$0xff]
    %v922 = vld [vmem:[#allocation10 + $0xe8] sm:$0xff]
    %v923 = vld [vmem:[#allocation10 + $0xf0] sm:$0xff]
    %v924 = vld [vmem:[#allocation10 + $0xf8] sm:$0xff]
    %v925 = vld [vmem:[%s6] sm:$0x3]
    %v927 = vlaneseq
    %v928 = vshrl.u32 %v927, 7
    %v929 = vsub.s32 0, %v928
    %v930 = vrot.slane %v925, %v929
    %v931 = vlaneseq
    %v932 = vshrl.u32 %v931, 7
    %v933 = vsub.s32 1, %v932
    %v934 = vrot.slane %v925, %v933
    %v969 = vunpack.c.l.b16 %v893
    %v970 = vunpack.c.h.b16 %v893
    %v971 = vunpack.c.l.b16 %v894
    %v972 = vunpack.c.h.b16 %v894
    %v973 = vunpack.c.l.b16 %v895
    %v974 = vunpack.c.h.b16 %v895
    %v975 = vunpack.c.l.b16 %v896
    %v976 = vunpack.c.h.b16 %v896
    %v977 = vunpack.c.l.b16 %v897
    %v978 = vunpack.c.h.b16 %v897
    %v979 = vunpack.c.l.b16 %v898
    %v980 = vunpack.c.h.b16 %v898
    %v981 = vunpack.c.l.b16 %v899
    %v982 = vunpack.c.h.b16 %v899
    %v983 = vunpack.c.l.b16 %v900
    %v984 = vunpack.c.h.b16 %v900
    %v985 = vunpack.c.l.b16 %v901
    %v986 = vunpack.c.h.b16 %v901
    %v987 = vunpack.c.l.b16 %v902
    %v988 = vunpack.c.h.b16 %v902
    %v989 = vunpack.c.l.b16 %v903
    %v990 = vunpack.c.h.b16 %v903
    %v991 = vunpack.c.l.b16 %v904
    %v992 = vunpack.c.h.b16 %v904
    %v993 = vunpack.c.l.b16 %v905
    %v994 = vunpack.c.h.b16 %v905
    %v995 = vunpack.c.l.b16 %v906
    %v996 = vunpack.c.h.b16 %v906
    %v997 = vunpack.c.l.b16 %v907
    %v998 = vunpack.c.h.b16 %v907
    %v999 = vunpack.c.l.b16 %v908
    %v1000 = vunpack.c.h.b16 %v908
    %v1001 = vunpack.c.l.b16 %v909
    %v1002 = vunpack.c.h.b16 %v909
    %v1003 = vunpack.c.l.b16 %v910
    %v1004 = vunpack.c.h.b16 %v910
    %v1005 = vunpack.c.l.b16 %v911
    %v1006 = vunpack.c.h.b16 %v911
    %v1007 = vunpack.c.l.b16 %v912
    %v1008 = vunpack.c.h.b16 %v912
    %v1009 = vunpack.c.l.b16 %v913
    %v1010 = vunpack.c.h.b16 %v913
    %v1011 = vunpack.c.l.b16 %v914
    %v1012 = vunpack.c.h.b16 %v914
    %v1013 = vunpack.c.l.b16 %v915
    %v1014 = vunpack.c.h.b16 %v915
    %v1015 = vunpack.c.l.b16 %v916
    %v1016 = vunpack.c.h.b16 %v916
    %v1017 = vunpack.c.l.b16 %v917
    %v1018 = vunpack.c.h.b16 %v917
    %v1019 = vunpack.c.l.b16 %v918
    %v1020 = vunpack.c.h.b16 %v918
    %v1021 = vunpack.c.l.b16 %v919
    %v1022 = vunpack.c.h.b16 %v919
    %v1023 = vunpack.c.l.b16 %v920
    %v1024 = vunpack.c.h.b16 %v920
    %v1025 = vunpack.c.l.b16 %v921
    %v1026 = vunpack.c.h.b16 %v921
    %v1027 = vunpack.c.l.b16 %v922
    %v1028 = vunpack.c.h.b16 %v922
    %v1029 = vunpack.c.l.b16 %v923
    %v1030 = vunpack.c.h.b16 %v923
    %v1031 = vunpack.c.l.b16 %v924
    %v1032 = vunpack.c.h.b16 %v924
    %v1033 = vpack.c.b16 %v971, %v969
    %v1034 = vpack.c.b16 %v972, %v970
    %v1035 = vpack.c.b16 %v975, %v973
    %v1036 = vpack.c.b16 %v976, %v974
    %v1037 = vpack.c.b16 %v979, %v977
    %v1038 = vpack.c.b16 %v980, %v978
    %v1039 = vpack.c.b16 %v983, %v981
    %v1040 = vpack.c.b16 %v984, %v982
    %v1041 = vpack.c.b16 %v987, %v985
    %v1042 = vpack.c.b16 %v988, %v986
    %v1043 = vpack.c.b16 %v991, %v989
    %v1044 = vpack.c.b16 %v992, %v990
    %v1045 = vpack.c.b16 %v995, %v993
    %v1046 = vpack.c.b16 %v996, %v994
    %v1047 = vpack.c.b16 %v999, %v997
    %v1048 = vpack.c.b16 %v1000, %v998
    %v1049 = vpack.c.b16 %v1003, %v1001
    %v1050 = vpack.c.b16 %v1004, %v1002
    %v1051 = vpack.c.b16 %v1007, %v1005
    %v1052 = vpack.c.b16 %v1008, %v1006
    %v1053 = vpack.c.b16 %v1011, %v1009
    %v1054 = vpack.c.b16 %v1012, %v1010
    %v1055 = vpack.c.b16 %v1015, %v1013
    %v1056 = vpack.c.b16 %v1016, %v1014
    %v1057 = vpack.c.b16 %v1019, %v1017
    %v1058 = vpack.c.b16 %v1020, %v1018
    %v1059 = vpack.c.b16 %v1023, %v1021
    %v1060 = vpack.c.b16 %v1024, %v1022
    %v1061 = vpack.c.b16 %v1027, %v1025
    %v1062 = vpack.c.b16 %v1028, %v1026
    %v1063 = vpack.c.b16 %v1031, %v1029
    %v1064 = vpack.c.b16 %v1032, %v1030
    %1097 = vmatprep.subr.bf16.mxu0 %v1048
    %1098 = vmatpush1.bf16.msra.mxu0 %v1047
    %1099 = vmatprep.subr.bf16.mxu0 %v1046
    %1100 = vmatpush1.bf16.msra.mxu0 %v1045
    %1101 = vmatprep.subr.bf16.mxu0 %v1044
    %1102 = vmatpush1.bf16.msra.mxu0 %v1043
    %1103 = vmatprep.subr.bf16.mxu0 %v1042
    %1104 = vmatpush1.bf16.msra.mxu0 %v1041
    %1105 = vmatprep.subr.bf16.mxu0 %v1040
    %1106 = vmatpush1.bf16.msra.mxu0 %v1039
    %1107 = vmatprep.subr.bf16.mxu0 %v1038
    %1108 = vmatpush1.bf16.msra.mxu0 %v1037
    %1109 = vmatprep.subr.bf16.mxu0 %v1036
    %1110 = vmatpush1.bf16.msra.mxu0 %v1035
    %1111 = vmatprep.subr.bf16.mxu0 %v1034
    %1112 = vmatpush1.bf16.msra.mxu0 %v1033
    %1113 = vmatprep.subr.bf16.mxu0 %v1064
    %1114 = vmatpush2.bf16.msra.mxu0 %v1063
    %1115 = vmatprep.subr.bf16.mxu0 %v1062
    %1116 = vmatpush2.bf16.msra.mxu0 %v1061
    %1117 = vmatprep.subr.bf16.mxu0 %v1060
    %1118 = vmatpush2.bf16.msra.mxu0 %v1059
    %1119 = vmatprep.subr.bf16.mxu0 %v1058
    %1120 = vmatpush2.bf16.msra.mxu0 %v1057
    %1121 = vmatprep.subr.bf16.mxu0 %v1056
    %1122 = vmatpush2.bf16.msra.mxu0 %v1055
    %1123 = vmatprep.subr.bf16.mxu0 %v1054
    %1124 = vmatpush2.bf16.msra.mxu0 %v1053
    %1125 = vmatprep.subr.bf16.mxu0 %v1052
    %1126 = vmatpush2.bf16.msra.mxu0 %v1051
    %1127 = vmatprep.subr.bf16.mxu0 %v1050
    %1128 = vmatpush2.bf16.msra.mxu0 %v1049
    %1129 = vmatprep.mubr.bf16.mxu0 %v892
    %1130 = vmatmul.mubr.bf16.gmra.mxu0 %v891
    %v1131 = vpop.f32.mrf.mxu0
    %v1132 = vadd.f32 %v930, %v1131
    %v1133 = vpop.f32.mrf.mxu0
    %v1134 = vadd.f32 %v934, %v1133
    %v1135 = vpop.f32.mrf.mxu0
    %v1136 = vpop.f32.mrf.mxu0
    %1137 = vdwg.mxu0
    %v1138 = vmul.f32 %v1132, %v1134
    %1139 = vadd.xlane.f32.xlu0 %v1138
    %v1140 = vpop.xlane.xlu0 %1139
    %v1141 = vmul.f32 %v1132, %v1132
    %1142 = vadd.xlane.f32.xlu0 %v1141
    %v1143 = vpop.xlane.xlu0 %1142
    %v1144 = vmul.f32 %v1134, %v1134
    %1145 = vadd.xlane.f32.xlu0 %v1144
    %v1146 = vpop.xlane.xlu0 %1145
    %v1147 = vmul.f32 %v1143, %v1146
    %v1148 = vmax.f32 %v1147, 1e-16
    %v1149 = vrsqrt.pop %v1148
    %v1150 = vmul.f32 %v1140, %v1149
    %v1151 = vadd.f32 %v1150, 1.0
    %v1152 = vmul.f32 %v1151, 0.5
    %v1154 = vlaneseq
    %v1155 = vand.u32 %v1154, 127
    %v1156 = vlaneseq
    %v1157 = vshrl.u32 %v1156, 7
    %v1158 = vsub.s32 %v1155, %v1157
    %v1159 = vrot.slane %v1152, %v1158
    %vm1161 = vcmask 57344
    %1162 = vst.msk [vmem:[#allocation11] sm:$0x1] %vm1161, %v1159
    // Predicated region
    $region50: #{tpu_custom_call.1} parent=1 // pred_check
      _
    $region51: #{tpu_custom_call.1} parent=1 // pred_check_branch
      %1164 = sbr.rel (0) target = $region53
    $region52: #{tpu_custom_call.1} parent=1 // pred_region
      %s1166 = ssub.s32 16, 16
      %1167 = vsyncadd [#allocation4], %s1166
      %s1169 = sshll.u32 [#allocation11], 4
      %s1170 = int_to_ptr.vmem [resolvable:$true] %s1169
      %1172 = dma.vmem_to_hbm [thread:$0]  %s1170, 16, %s7, [#allocation4]
    $region53: #{tpu_custom_call.1} parent=1 // pred_fallthru
      _
    // Predicated region
    $region54: #{tpu_custom_call.1} parent=1 // pred_check
      _
    $region55: #{tpu_custom_call.1} parent=1 // pred_check_branch
      %1174 = sbr.rel (0) target = $region57
    $region56: #{tpu_custom_call.1} parent=1 // pred_region
      %1175 = dma.done [#allocation4], 16
    $region57: #{tpu_custom_call.1} parent=1 // pred_fallthru
      _
    %1176 = vsyncpa [#allocation3], 1
    %1177 = vsyncpa [#allocation6], 1
    %1178 = vsyncpa [#allocation9], 1
    %1179 = vsyncpa [#allocation4], 1

</llo_original>
